<compile_context>
chip_gen: v6e
topology: v6e:2x2x1
jax: 0.10.0
libtpu: 0.0.40
codegen_flags: <defaults>
</compile_context>

<pallas_src>
import functools
import math

import jax
import jax.numpy as jnp
from jax import lax
from jax.experimental import pallas as pl
from jax.experimental.pallas import tpu as pltpu


# ----------------------------------------------------------------------------
# helpers
# ----------------------------------------------------------------------------
def _pick_tile(dim, targets):
    """Largest target tile that evenly divides `dim`, else the full dim
    (a block equal to the full array dim is exempt from the (8,128) rule)."""
    for t in targets:
        if dim >= t and dim % t == 0:
            return t
    return dim


def _pick_head_block(head_count, dim_per_head):
    """#heads per grid step so the column block width (hblk*dph) is lane-dense
    (a multiple of 128); fall back to all heads (block width == model_dim, which
    is exempt from the 128-divisibility rule when it equals the full dim)."""
    if dim_per_head % 128 == 0:
        return 1
    if 128 % dim_per_head == 0:
        hb = 128 // dim_per_head
        if head_count % hb == 0:
            return hb
    return head_count


@functools.lru_cache(maxsize=1)
def _vmem_budget():
    """Scoped-VMEM limit: ~3/4 of physical VMEM (=> ~96 MiB on 128 MiB v5e/v6e,
    ~48 MiB on 64 MiB-per-TC v7x). Conservative 48 MiB fallback if the query fails."""
    try:
        cap = int(pltpu.get_tpu_info().vmem_capacity_bytes)
    except Exception:
        cap = 64 * 1024 * 1024
    return max(32 * 1024 * 1024, min((cap * 3) // 4, 96 * 1024 * 1024))


# ----------------------------------------------------------------------------
# tiled, pipelined linear:  y = x @ w_t + b   (x: [M, K], w_t: [K, N] bf16, b: [N] f32)
# ----------------------------------------------------------------------------
def _linear_kernel(x_ref, w_ref, b_ref, o_ref, acc_ref):
    k = pl.program_id(2)

    @pl.when(k == 0)
    def _():
        # start the f32 accumulator at the broadcast bias
        acc_ref[...] = jnp.broadcast_to(b_ref[...].astype(jnp.float32), acc_ref.shape)

    # bf16 operands feed the MXU at native rate; accumulation stays f32.
    acc_ref[...] += jnp.dot(x_ref[...].astype(jnp.bfloat16),
                            w_ref[...].astype(jnp.bfloat16),
                            preferred_element_type=jnp.float32)

    @pl.when(k == pl.num_programs(2) - 1)
    def _():
        o_ref[...] = acc_ref[...].astype(o_ref.dtype)


def linear_pallas(x2d, w_t, b, out_dtype=None):
    out_dtype = out_dtype or x2d.dtype
    m, kdim = x2d.shape
    n = w_t.shape[1]
    tm = _pick_tile(m, (512, 256, 128, 16))
    if tm == m and m > 1024:
        # awkward large M: pad rows to a 512-multiple, run, drop the padding
        m_pad = ((m + 511) // 512) * 512
        x_pad = jnp.pad(x2d, ((0, m_pad - m), (0, 0)))
        return linear_pallas(x_pad, w_t, b, out_dtype)[:m]
    tn = _pick_tile(n, (512, 256, 128))
    tk = _pick_tile(kdim, (512, 256, 128))
    grid = (m // tm, n // tn, kdim // tk)
    return pl.pallas_call(
        _linear_kernel,
        out_shape=jax.ShapeDtypeStruct((m, n), out_dtype),
        grid_spec=pltpu.PrefetchScalarGridSpec(
            num_scalar_prefetch=0,
            grid=grid,
            in_specs=[
                pl.BlockSpec((tm, tk), lambda i, j, k: (i, k)),
                pl.BlockSpec((tk, tn), lambda i, j, k: (k, j)),
                pl.BlockSpec((1, tn), lambda i, j, k: (0, j)),
            ],
            out_specs=pl.BlockSpec((tm, tn), lambda i, j, k: (i, j)),
            scratch_shapes=[pltpu.VMEM((tm, tn), jnp.float32)],
        ),
        compiler_params=pltpu.CompilerParams(
            dimension_semantics=("parallel", "parallel", "arbitrary"),
            vmem_limit_bytes=_vmem_budget(),
        ),
    )(x2d, w_t, b.reshape(1, n))


# ----------------------------------------------------------------------------
# flash-style multi-head attention on the [B, L, D] layout
#   grid = (batch, head_block, q_tile, kv_tile), kv innermost ("arbitrary")
#   online-softmax state (m, l, ctx accumulator) lives in VMEM scratch
# ----------------------------------------------------------------------------
def _flash_attn_kernel(q_ref, k_ref, v_ref, o_ref, m_ref, l_ref, acc_ref, *, hblk, dph):
    kv = pl.program_id(3)
    tq = q_ref.shape[1]

    @pl.when(kv == 0)
    def _():
        m_ref[...] = jnp.full_like(m_ref, -jnp.inf)
        l_ref[...] = jnp.zeros_like(l_ref)
        acc_ref[...] = jnp.zeros_like(acc_ref)

    # bf16 MXU operands (f32 accumulation); q/k/v are loaded ONCE full-width.
    q = q_ref[0].astype(jnp.bfloat16)          # (tq, hblk*dph)
    k = k_ref[0].astype(jnp.bfloat16)          # (tk, hblk*dph)
    v = v_ref[0].astype(jnp.bfloat16)          # (tk, hblk*dph)
    acc_prev = acc_ref[...]                    # one lane-dense (tq, width) load

    # Static unroll over the (small) head block; q/k/v are sliced as VALUES so
    # every VMEM store below stays full-width lane-dense.
    # TODO(synk): attention mask (masked_fill) and dropout on the probabilities
    # are omitted (mask=None / inference semantics).
    ctx_cols, alpha_cols = [], []
    for h in range(hblk):
        lo, hi = h * dph, (h + 1) * dph
        # QK^T: contract last dims on the MXU (no materialized K transpose);
        # the 1/sqrt(dph) scale is folded into Wq.
        s = lax.dot_general(q[:, lo:hi], k[:, lo:hi],
                            (((1,), (1,)), ((), ())),
                            preferred_element_type=jnp.float32)        # (tq, tk)
        m_prev = m_ref[h]                                               # (tq, 1)
        m_new = jnp.maximum(m_prev, s.max(axis=-1, keepdims=True))
        alpha = jnp.exp(m_prev - m_new)                                 # (tq, 1)
        p = jnp.exp(s - m_new)                                          # (tq, tk) f32
        l_ref[h] = alpha * l_ref[h] + p.sum(axis=-1, keepdims=True)
        m_ref[h] = m_new
        ctx_cols.append(
            lax.dot_general(p.astype(jnp.bfloat16), v[:, lo:hi],
                            (((1,), (0,)), ((), ())),
                            preferred_element_type=jnp.float32))        # (tq, dph)
        alpha_cols.append(jnp.broadcast_to(alpha, (tq, dph)))

    ctx_full = ctx_cols[0] if hblk == 1 else jnp.concatenate(ctx_cols, axis=-1)
    alpha_full = alpha_cols[0] if hblk == 1 else jnp.concatenate(alpha_cols, axis=-1)
    # single full-width accumulator update per kv step (no sub-128-lane RMWs)
    acc_ref[...] = alpha_full * acc_prev + ctx_full

    @pl.when(kv == pl.num_programs(3) - 1)
    def _():
        inv_cols = [jnp.broadcast_to(pl.reciprocal(l_ref[h], approx=True), (tq, dph))
                    for h in range(hblk)]
        inv_full = inv_cols[0] if hblk == 1 else jnp.concatenate(inv_cols, axis=-1)
        # one lane-dense store of the normalized context
        o_ref[0, :, :] = (acc_ref[...] * inv_full).astype(o_ref.dtype)


def attention_pallas(q_arr, k_arr, v_arr, *, heads, dph, hblk,
                     q_hb_off=0, k_hb_off=0, v_hb_off=0, out_dtype=None):
    """q/k/v are [B, L, n*width] slabs; head-block `off + hb` of the columns holds
    that head block's projections. Returns context in [B, Lq, heads*dph] layout."""
    out_dtype = out_dtype or q_arr.dtype
    b, lq, _ = q_arr.shape
    lk = k_arr.shape[1]
    width = hblk * dph
    n_hb = heads // hblk
    tq = _pick_tile(lq, (512, 256, 128, 16))
    # bound the per-step (tq, tk) f32 score/prob temporaries when the head block
    # is unrolled (hblk > 2) so live ranges / VMEM-temporary pressure stay modest
    tk = _pick_tile(lk, (512, 256, 128, 16) if hblk <= 2 else (256, 128, 16))
    grid = (b, n_hb, lq // tq, lk // tk)
    kernel = functools.partial(_flash_attn_kernel, hblk=hblk, dph=dph)
    return pl.pallas_call(
        kernel,
        out_shape=jax.ShapeDtypeStruct((b, lq, heads * dph), out_dtype),
        grid_spec=pltpu.PrefetchScalarGridSpec(
            num_scalar_prefetch=0,
            grid=grid,
            in_specs=[
                pl.BlockSpec((1, tq, width),
                             lambda bb, hb, qi, ki: (bb, qi, q_hb_off + hb)),
                pl.BlockSpec((1, tk, width),
                             lambda bb, hb, qi, ki: (bb, ki, k_hb_off + hb)),
                pl.BlockSpec((1, tk, width),
                             lambda bb, hb, qi, ki: (bb, ki, v_hb_off + hb)),
            ],
            out_specs=pl.BlockSpec((1, tq, width),
                                   lambda bb, hb, qi, ki: (bb, qi, hb)),
            scratch_shapes=[
                pltpu.VMEM((hblk, tq, 1), jnp.float32),   # running max  m
                pltpu.VMEM((hblk, tq, 1), jnp.float32),   # running sum  l
                pltpu.VMEM((tq, width), jnp.float32),     # f32 context accumulator
            ],
        ),
        compiler_params=pltpu.CompilerParams(
            dimension_semantics=("parallel", "parallel", "parallel", "arbitrary"),
            vmem_limit_bytes=_vmem_budget(),
        ),
    )(q_arr, k_arr, v_arr)


# ----------------------------------------------------------------------------
# Module-equivalent wrapper
# ----------------------------------------------------------------------------
class MultiHeadedAttentionPallas:
    """JAX/Pallas re-implementation of MultiHeadedAttention.forward
    (mask=None, layer_cache=None, dropout == identity)."""

    def __init__(self, head_count, model_dim, key, use_final_linear=True):
        assert model_dim % head_count == 0
        self.head_count = head_count
        self.model_dim = model_dim
        self.dim_per_head = model_dim // head_count
        self.use_final_linear = use_final_linear
        self.hblk = _pick_head_block(head_count, self.dim_per_head)

        ks = jax.random.split(key, 8)
        scale = 1.0 / math.sqrt(model_dim)

        def init_w(k):   # torch Linear weight is [out, in]; stored transposed [in, out]
            return (jax.random.uniform(k, (model_dim, model_dim), jnp.float32) * 2 - 1) * scale

        def init_b(k):
            return (jax.random.uniform(k, (model_dim,), jnp.float32) * 2 - 1) * scale

        # f32 master parameters (used by the pure-JAX reference)
        self.wk_t, self.bk = init_w(ks[0]), init_b(ks[1])
        self.wv_t, self.bv = init_w(ks[2]), init_b(ks[3])
        self.wq_t, self.bq = init_w(ks[4]), init_b(ks[5])
        self.wo_t, self.bo = init_w(ks[6]), init_b(ks[7])

        # Kernel-side weights in bf16 (native MXU rate + half the weight DMA bytes);
        # biases stay f32 and 1/sqrt(dph) is folded into Wq (removes the per-element
        # scale from the attention hot loop).
        inv = 1.0 / math.sqrt(self.dim_per_head)
        wq_s = self.wq_t * inv
        self._bq_s = self.bq * inv
        bf = jnp.bfloat16
        self._wq_bf = wq_s.astype(bf)
        self._wk_bf = self.wk_t.astype(bf)
        self._wv_bf = self.wv_t.astype(bf)
        self._wo_bf = self.wo_t.astype(bf)
        # fused QKV (self-attention) and fused KV (encoder-memory cross-attention)
        self._w_qkv_bf = jnp.concatenate([wq_s, self.wk_t, self.wv_t], axis=1).astype(bf)
        self._b_qkv = jnp.concatenate([self._bq_s, self.bk, self.bv], axis=0)
        self._w_kv_bf = jnp.concatenate([self.wk_t, self.wv_t], axis=1).astype(bf)
        self._b_kv = jnp.concatenate([self.bk, self.bv], axis=0)

    def __call__(self, key_in, value_in, query_in):
        b, lk, d = key_in.shape
        lq = query_in.shape[1]
        h, dph, hblk = self.head_count, self.dim_per_head, self.hblk
        n_hb = h // hblk
        lane_ok = (hblk * dph) % 128 == 0
        act_dt = jnp.bfloat16          # intermediate activation slabs live in bf16
        same_kv = key_in is value_in
        same_all = same_kv and (query_in is key_in)

        if same_all and lane_ok:
            # self-attention: single fused [D, 3D] projection; the attention
            # BlockSpecs index q/k/v column head-blocks directly inside the slab.
            qkv = linear_pallas(query_in.reshape(b * lq, d),
                                self._w_qkv_bf, self._b_qkv, act_dt).reshape(b, lq, 3 * d)
            q_arr = k_arr = v_arr = qkv
            q_off, k_off, v_off = 0, n_hb, 2 * n_hb
        else:
            q_arr = linear_pallas(query_in.reshape(b * lq, d),
                                  self._wq_bf, self._bq_s, act_dt).reshape(b, lq, d)
            q_off = 0
            if same_kv and lane_ok:
                # encoder-memory cross-attention: fused [D, 2D] K/V projection
                kv = linear_pallas(key_in.reshape(b * lk, d),
                                   self._w_kv_bf, self._b_kv, act_dt).reshape(b, lk, 2 * d)
                k_arr = v_arr = kv
                k_off, v_off = 0, n_hb
            else:
                k_arr = linear_pallas(key_in.reshape(b * lk, d),
                                      self._wk_bf, self.bk, act_dt).reshape(b, lk, d)
                v_arr = linear_pallas(value_in.reshape(b * lk, d),
                                      self._wv_bf, self.bv, act_dt).reshape(b, lk, d)
                k_off = v_off = 0

        ctx_dt = act_dt if self.use_final_linear else jnp.float32
        context = attention_pallas(q_arr, k_arr, v_arr, heads=h, dph=dph, hblk=hblk,
                                   q_hb_off=q_off, k_hb_off=k_off, v_hb_off=v_off,
                                   out_dtype=ctx_dt)

        if self.use_final_linear:
            out = linear_pallas(context.reshape(b * lq, d), self._wo_bf, self.bo,
                                jnp.float32)
            return out.reshape(b, lq, d)
        # torch returns the per-head context [B, H, Lq, dph] in this mode
        return context.reshape(b, lq, h, dph).transpose(0, 2, 1, 3)


# ----------------------------------------------------------------------------
# Pure-JAX reference (high precision, f32 weights) for sanity check
# ----------------------------------------------------------------------------
def reference_forward(mha, key_in, value_in, query_in):
    with jax.default_matmul_precision("highest"):
        b, lk, d = key_in.shape
        lq = query_in.shape[1]
        h, dph = mha.head_count, mha.dim_per_head
        k = key_in @ mha.wk_t + mha.bk
        v = value_in @ mha.wv_t + mha.bv
        q = query_in @ mha.wq_t + mha.bq
        sh = lambda x, L: x.reshape(b, L, h, dph).transpose(0, 2, 1, 3)
        q, k, v = sh(q, lq), sh(k, lk), sh(v, lk)
        q = q / math.sqrt(dph)
        scores = jnp.einsum("bhqd,bhkd->bhqk", q, k)
        attn = jax.nn.softmax(scores, axis=-1)
        ctx_heads = jnp.einsum("bhqk,bhkd->bhqd", attn, v)
        if mha.use_final_linear:
            ctx = ctx_heads.transpose(0, 2, 1, 3).reshape(b, lq, d)
            return ctx @ mha.wo_t + mha.bo
        return ctx_heads


if __name__ == "__main__":
    batch, lq, lk, model_dim, heads = 2, 128, 384, 128, 4
    root = jax.random.PRNGKey(0)
    k_param, k_key, k_val, k_qry, k_self = jax.random.split(root, 5)

    mha = MultiHeadedAttentionPallas(heads, model_dim, k_param)

    key_in = jax.random.normal(k_key, (batch, lk, model_dim), jnp.float32)
    value_in = jax.random.normal(k_val, (batch, lk, model_dim), jnp.float32)
    query_in = jax.random.normal(k_qry, (batch, lq, model_dim), jnp.float32)

    # bf16 MXU operands (f32 accumulation) vs an all-f32 reference
    tol = dict(atol=1e-2, rtol=1e-2)

    # 1) cross-attention, distinct q/k/v inputs, multiple KV tiles
    #    (separate-projection path + online-softmax accumulation)
    out = jax.block_until_ready(mha(key_in, value_in, query_in))
    assert out.shape == (batch, lq, model_dim)
    ref = reference_forward(mha, key_in, value_in, query_in)
    assert jnp.allclose(out, ref, **tol), (
        f"cross-attention mismatch, max abs err {jnp.max(jnp.abs(out - ref))}")

    # 2) encoder-memory cross-attention (key is value): fused K/V projection path
    out_mem = jax.block_until_ready(mha(key_in, key_in, query_in))
    ref_mem = reference_forward(mha, key_in, key_in, query_in)
    assert jnp.allclose(out_mem, ref_mem, **tol), (
        f"fused-KV mismatch, max abs err {jnp.max(jnp.abs(out_mem - ref_mem))}")

    # 3) self-attention (query is key is value): fused QKV projection path
    x = jax.random.normal(k_self, (batch, lq, model_dim), jnp.float32)
    out_self = jax.block_until_ready(mha(x, x, x))
    ref_self = reference_forward(mha, x, x, x)
    assert jnp.allclose(out_self, ref_self, **tol), (
        f"self-attention mismatch, max abs err {jnp.max(jnp.abs(out_self - ref_self))}")

    print("KERNEL_OK")
</pallas_src>

<mosaic_0001>
module attributes {stable_mosaic.version = 11 : i64} {
  func.func @_linear_kernel(%arg0: i32, %arg1: i32, %arg2: i32, %arg3: memref<256x128xf32, #tpu.memory_space<vmem>>, %arg4: memref<128x128xbf16, #tpu.memory_space<vmem>>, %arg5: memref<1x128xf32, #tpu.memory_space<vmem>>, %arg6: memref<256x128xbf16, #tpu.memory_space<vmem>>, %arg7: memref<256x128xf32, #tpu.memory_space<vmem>>) attributes {dimension_semantics = [#tpu.dimension_semantics<parallel>, #tpu.dimension_semantics<parallel>, #tpu.dimension_semantics<arbitrary>], iteration_bounds = array<i64: 1, 1, 1>, scalar_prefetch = 0 : i64, scratch_operands = 1 : i64, tpu.core_type = #tpu.core_type<tc>, window_params = [{transform_indices = @transform_0, window_bounds = array<i64: 256, 128>}, {transform_indices = @transform_1, window_bounds = array<i64: 128, 128>}, {transform_indices = @transform_2, window_bounds = array<i64: 1, 128>}, {transform_indices = @transform_3, window_bounds = array<i64: 256, 128>}]} {
    %c0_i32 = arith.constant 0 : i32
    %0 = arith.cmpi eq, %arg2, %c0_i32 : i32
    %1 = arith.extui %0 : i1 to i32
    %c0_i32_0 = arith.constant 0 : i32
    %2 = arith.cmpi ne, %1, %c0_i32_0 : i32
    scf.if %2 {
      %c0_10 = arith.constant 0 : index
      %c0_11 = arith.constant 0 : index
      %13 = vector.load %arg5[%c0_10, %c0_11] : memref<1x128xf32, #tpu.memory_space<vmem>>, vector<1x128xf32>
      %14 = vector.shape_cast %13 : vector<1x128xf32> to vector<1x128xf32>
      %15 = vector.broadcast %14 : vector<1x128xf32> to vector<256x128xf32>
      %c0_12 = arith.constant 0 : index
      %c0_13 = arith.constant 0 : index
      %16 = vector.load %arg7[%c0_12, %c0_13] : memref<256x128xf32, #tpu.memory_space<vmem>>, vector<256x128xf32>
      tpu.vector_store %arg7[%c0_12, %c0_13], %15 {strides = array<i32>} : memref<256x128xf32, #tpu.memory_space<vmem>>, vector<256x128xf32>,
    } else {
    }
    %c0 = arith.constant 0 : index
    %c0_1 = arith.constant 0 : index
    %3 = vector.load %arg7[%c0, %c0_1] : memref<256x128xf32, #tpu.memory_space<vmem>>, vector<256x128xf32>
    %c0_2 = arith.constant 0 : index
    %c0_3 = arith.constant 0 : index
    %4 = vector.load %arg3[%c0_2, %c0_3] : memref<256x128xf32, #tpu.memory_space<vmem>>, vector<256x128xf32>
    %5 = arith.truncf %4 : vector<256x128xf32> to vector<256x128xbf16>
    %c0_4 = arith.constant 0 : index
    %c0_5 = arith.constant 0 : index
    %6 = vector.load %arg4[%c0_4, %c0_5] : memref<128x128xbf16, #tpu.memory_space<vmem>>, vector<128x128xbf16>
    %cst = arith.constant dense<0.000000e+00> : vector<256x128xf32>
    %7 = tpu.matmul %5, %6, %cst {dimension_numbers = #tpu.dot_dimension_numbers<[1], [0], [0], [1], [0, 0, 1, 1], [], []>} : vector<256x128xbf16>, vector<128x128xbf16>, vector<256x128xf32> -> vector<256x128xf32>
    %8 = arith.addf %3, %7 : vector<256x128xf32>
    %c0_6 = arith.constant 0 : index
    %c0_7 = arith.constant 0 : index
    %9 = vector.load %arg7[%c0_6, %c0_7] : memref<256x128xf32, #tpu.memory_space<vmem>>, vector<256x128xf32>
    tpu.vector_store %arg7[%c0_6, %c0_7], %8 {strides = array<i32>} : memref<256x128xf32, #tpu.memory_space<vmem>>, vector<256x128xf32>,
    %c0_i32_8 = arith.constant 0 : i32
    %10 = arith.cmpi eq, %arg2, %c0_i32_8 : i32
    %11 = arith.extui %10 : i1 to i32
    %c0_i32_9 = arith.constant 0 : i32
    %12 = arith.cmpi ne, %11, %c0_i32_9 : i32
    scf.if %12 {
      %c0_10 = arith.constant 0 : index
      %c0_11 = arith.constant 0 : index
      %13 = vector.load %arg7[%c0_10, %c0_11] : memref<256x128xf32, #tpu.memory_space<vmem>>, vector<256x128xf32>
      %14 = arith.truncf %13 : vector<256x128xf32> to vector<256x128xbf16>
      %c0_12 = arith.constant 0 : index
      %c0_13 = arith.constant 0 : index
      %15 = vector.load %arg6[%c0_12, %c0_13] : memref<256x128xbf16, #tpu.memory_space<vmem>>, vector<256x128xbf16>
      tpu.vector_store %arg6[%c0_12, %c0_13], %14 {strides = array<i32>} : memref<256x128xbf16, #tpu.memory_space<vmem>>, vector<256x128xbf16>,
    } else {
    }
    return
  }
  func.func @transform_0(%arg0: i32, %arg1: i32, %arg2: i32) -> (i32, i32) {
    %c0_i32 = arith.constant 0 : i32
    return %arg0, %arg2 : i32, i32
  }
  func.func @transform_1(%arg0: i32, %arg1: i32, %arg2: i32) -> (i32, i32) {
    %c0_i32 = arith.constant 0 : i32
    return %arg2, %arg1 : i32, i32
  }
  func.func @transform_2(%arg0: i32, %arg1: i32, %arg2: i32) -> (i32, i32) {
    %c0_i32 = arith.constant 0 : i32
    %c0_i32_0 = arith.constant 0 : i32
    return %c0_i32, %arg1 : i32, i32
  }
  func.func @transform_3(%arg0: i32, %arg1: i32, %arg2: i32) -> (i32, i32) {
    %c0_i32 = arith.constant 0 : i32
    return %arg0, %arg1 : i32, i32
  }
}

</mosaic_0001>

<llo_original>
// kernel: tpu_custom_call.1
$region0: #{tpu_custom_call.1}
  #allocation0 [shape = 'u32[]', space=smem, size = 0x4, offset = 0x4, fixed_abs, tag = 'smem constant byte address 0x4 - core index']
  #allocation1 [shape = 'u32[144,128]{1,0:T(1,128)}', space=vmem, size = 0x12000, scoped, tag = 'internal scratch']
  #allocation2 [shape = 'f32[256,128]{1,0:T(8,128)}', space=vmem, size = 0x20000, scoped, tag = 'scratch operand']
  %s0 = inlined_call_operand.hbm [shape: f32[256,128], index: 0, kind: input, shape index: {}]
  %s1 = inlined_call_operand.hbm [shape: bf16[128,128], index: 1, kind: input, shape index: {}]
  %s2 = inlined_call_operand.vmem [shape: f32[1,128], index: 2, kind: input, shape index: {}]
  %s3 = inlined_call_operand.hbm [shape: bf16[256,128], index: 3, kind: output, shape index: {}]
  %s4 = sld [smem:[#allocation0]]
  $region38: #{tpu_custom_call.1} parent=0
    _
  %s6 = ssub.s32 1, %s4
  %s7 = scalar_select 0, %s6, %s4
  $region1: #{tpu_custom_call.1} parent=0
    #allocation3 [shape = 'u8[131072]{0}', space=vmem, size = 0x20000, scoped, tag = 'input window, operand 0, single buffered']
    #allocation4 [shape = 's32[1]{0}', space=sflag, size = 0x4, scoped, tag = 'scoped memory for tpu_custom_call.1']
    #allocation5 [shape = 's32[1]{0}', space=sflag, size = 0x4, scoped, tag = 'scoped memory for tpu_custom_call.1']
    #allocation6 [shape = 'u8[32768]{0}', space=vmem, size = 0x8000, scoped, tag = 'input window, operand 1, single buffered']
    #allocation7 [shape = 's32[1]{0}', space=sflag, size = 0x4, scoped, tag = 'scoped memory for tpu_custom_call.1']
    #allocation8 [shape = 'u8[65536]{0}', space=vmem, size = 0x10000, scoped, tag = 'output window, operand 0, single buffered']
    %8 = vsyncpa [#allocation4], 0
    %9 = vsyncpa [#allocation7], 0
    %10 = vsyncpa [#allocation5], 0
    // Predicated region
    $region2: #{tpu_custom_call.1} parent=1 // pred_check
      _
    $region3: #{tpu_custom_call.1} parent=1 // pred_check_branch
      %12 = sbr.rel (0) target = $region5
    $region4: #{tpu_custom_call.1} parent=1 // pred_region
      %s14 = ssub.s32 4096, 4096
      %15 = vsyncadd [#allocation4], %s14
      %s16 = sshll.u32 [#allocation3], 4
      %s17 = int_to_ptr.vmem [resolvable:$true] %s16
      %22 = dma.hbm_to_vmem [thread:$0]  %s0, 4096, %s17, [#allocation4], 128, 128, 8
    $region5: #{tpu_custom_call.1} parent=1 // pred_fallthru
      _
    // Predicated region
    $region6: #{tpu_custom_call.1} parent=1 // pred_check
      _
    $region7: #{tpu_custom_call.1} parent=1 // pred_check_branch
      %24 = sbr.rel (0) target = $region9
    $region8: #{tpu_custom_call.1} parent=1 // pred_region
      %s26 = ssub.s32 1024, 1024
      %27 = vsyncadd [#allocation7], %s26
      %s28 = sshll.u32 [#allocation6], 4
      %s29 = int_to_ptr.vmem [resolvable:$true] %s28
      %34 = dma.hbm_to_vmem [thread:$0]  %s1, 1024, %s29, [#allocation7], 64, 64, 4
    $region9: #{tpu_custom_call.1} parent=1 // pred_fallthru
      _
    // Predicated region
    $region10: #{tpu_custom_call.1} parent=1 // pred_check
      _
    $region11: #{tpu_custom_call.1} parent=1 // pred_check_branch
      %36 = sbr.rel (0) target = $region13
    $region12: #{tpu_custom_call.1} parent=1 // pred_region
      _
    $region13: #{tpu_custom_call.1} parent=1 // pred_fallthru
      _
    // Predicated region
    $region14: #{tpu_custom_call.1} parent=1 // pred_check
      _
    $region15: #{tpu_custom_call.1} parent=1 // pred_check_branch
      %38 = sbr.rel (0) target = $region17
    $region16: #{tpu_custom_call.1} parent=1 // pred_region
      %39 = dma.done [#allocation4], 4096
    $region17: #{tpu_custom_call.1} parent=1 // pred_fallthru
      _
    // Predicated region
    $region18: #{tpu_custom_call.1} parent=1 // pred_check
      _
    $region19: #{tpu_custom_call.1} parent=1 // pred_check_branch
      %41 = sbr.rel (0) target = $region21
    $region20: #{tpu_custom_call.1} parent=1 // pred_region
      %42 = dma.done [#allocation7], 1024
    $region21: #{tpu_custom_call.1} parent=1 // pred_fallthru
      _
    %p44 = scmp.eq.s32.totalorder 0, 0
    // Predicated region
    $region22: #{tpu_custom_call.1} parent=1 // pred_check
      %p45 = pneg %p44
    $region23: #{tpu_custom_call.1} parent=1 // pred_check_branch
      %47 = sbr.rel (%p45) target = $region25
    $region24: #{tpu_custom_call.1} parent=1 // pred_region
      %v48 = vld [vmem:[%s2] sm:$0x1]
      %v50 = vlaneseq
      %v51 = vshrl.u32 %v50, 7
      %v52 = vsub.s32 0, %v51
      %v53 = vrot.slane %v48, %v52
      %55 = vst [vmem:[#allocation2] sm:$0xff] %v53
      %56 = vst [vmem:[#allocation2 + $0x8] sm:$0xff] %v53
      %57 = vst [vmem:[#allocation2 + $0x10] sm:$0xff] %v53
      %58 = vst [vmem:[#allocation2 + $0x18] sm:$0xff] %v53
      %59 = vst [vmem:[#allocation2 + $0x20] sm:$0xff] %v53
      %60 = vst [vmem:[#allocation2 + $0x28] sm:$0xff] %v53
      %61 = vst [vmem:[#allocation2 + $0x30] sm:$0xff] %v53
      %62 = vst [vmem:[#allocation2 + $0x38] sm:$0xff] %v53
      %63 = vst [vmem:[#allocation2 + $0x40] sm:$0xff] %v53
      %64 = vst [vmem:[#allocation2 + $0x48] sm:$0xff] %v53
      %65 = vst [vmem:[#allocation2 + $0x50] sm:$0xff] %v53
      %66 = vst [vmem:[#allocation2 + $0x58] sm:$0xff] %v53
      %67 = vst [vmem:[#allocation2 + $0x60] sm:$0xff] %v53
      %68 = vst [vmem:[#allocation2 + $0x68] sm:$0xff] %v53
      %69 = vst [vmem:[#allocation2 + $0x70] sm:$0xff] %v53
      %70 = vst [vmem:[#allocation2 + $0x78] sm:$0xff] %v53
      %71 = vst [vmem:[#allocation2 + $0x80] sm:$0xff] %v53
      %72 = vst [vmem:[#allocation2 + $0x88] sm:$0xff] %v53
      %73 = vst [vmem:[#allocation2 + $0x90] sm:$0xff] %v53
      %74 = vst [vmem:[#allocation2 + $0x98] sm:$0xff] %v53
      %75 = vst [vmem:[#allocation2 + $0xa0] sm:$0xff] %v53
      %76 = vst [vmem:[#allocation2 + $0xa8] sm:$0xff] %v53
      %77 = vst [vmem:[#allocation2 + $0xb0] sm:$0xff] %v53
      %78 = vst [vmem:[#allocation2 + $0xb8] sm:$0xff] %v53
      %79 = vst [vmem:[#allocation2 + $0xc0] sm:$0xff] %v53
      %80 = vst [vmem:[#allocation2 + $0xc8] sm:$0xff] %v53
      %81 = vst [vmem:[#allocation2 + $0xd0] sm:$0xff] %v53
      %82 = vst [vmem:[#allocation2 + $0xd8] sm:$0xff] %v53
      %83 = vst [vmem:[#allocation2 + $0xe0] sm:$0xff] %v53
      %84 = vst [vmem:[#allocation2 + $0xe8] sm:$0xff] %v53
      %85 = vst [vmem:[#allocation2 + $0xf0] sm:$0xff] %v53
      %86 = vst [vmem:[#allocation2 + $0xf8] sm:$0xff] %v53
    $region25: #{tpu_custom_call.1} parent=1 // pred_fallthru
      _
    %v87 = vld [vmem:[#allocation2] sm:$0xff]
    %v88 = vld [vmem:[#allocation2 + $0x8] sm:$0xff]
    %v89 = vld [vmem:[#allocation2 + $0x10] sm:$0xff]
    %v90 = vld [vmem:[#allocation2 + $0x18] sm:$0xff]
    %v91 = vld [vmem:[#allocation2 + $0x20] sm:$0xff]
    %v92 = vld [vmem:[#allocation2 + $0x28] sm:$0xff]
    %v93 = vld [vmem:[#allocation2 + $0x30] sm:$0xff]
    %v94 = vld [vmem:[#allocation2 + $0x38] sm:$0xff]
    %v95 = vld [vmem:[#allocation2 + $0x40] sm:$0xff]
    %v96 = vld [vmem:[#allocation2 + $0x48] sm:$0xff]
    %v97 = vld [vmem:[#allocation2 + $0x50] sm:$0xff]
    %v98 = vld [vmem:[#allocation2 + $0x58] sm:$0xff]
    %v99 = vld [vmem:[#allocation2 + $0x60] sm:$0xff]
    %v100 = vld [vmem:[#allocation2 + $0x68] sm:$0xff]
    %v101 = vld [vmem:[#allocation2 + $0x70] sm:$0xff]
    %v102 = vld [vmem:[#allocation2 + $0x78] sm:$0xff]
    %v103 = vld [vmem:[#allocation2 + $0x80] sm:$0xff]
    %v104 = vld [vmem:[#allocation2 + $0x88] sm:$0xff]
    %v105 = vld [vmem:[#allocation2 + $0x90] sm:$0xff]
    %v106 = vld [vmem:[#allocation2 + $0x98] sm:$0xff]
    %v107 = vld [vmem:[#allocation2 + $0xa0] sm:$0xff]
    %v108 = vld [vmem:[#allocation2 + $0xa8] sm:$0xff]
    %v109 = vld [vmem:[#allocation2 + $0xb0] sm:$0xff]
    %v110 = vld [vmem:[#allocation2 + $0xb8] sm:$0xff]
    %v111 = vld [vmem:[#allocation2 + $0xc0] sm:$0xff]
    %v112 = vld [vmem:[#allocation2 + $0xc8] sm:$0xff]
    %v113 = vld [vmem:[#allocation2 + $0xd0] sm:$0xff]
    %v114 = vld [vmem:[#allocation2 + $0xd8] sm:$0xff]
    %v115 = vld [vmem:[#allocation2 + $0xe0] sm:$0xff]
    %v116 = vld [vmem:[#allocation2 + $0xe8] sm:$0xff]
    %v117 = vld [vmem:[#allocation2 + $0xf0] sm:$0xff]
    %v118 = vld [vmem:[#allocation2 + $0xf8] sm:$0xff]
    %v119 = vld [vmem:[#allocation3] sm:$0xff]
    %v120 = vld [vmem:[#allocation3 + $0x8] sm:$0xff]
    %v121 = vld [vmem:[#allocation3 + $0x10] sm:$0xff]
    %v122 = vld [vmem:[#allocation3 + $0x18] sm:$0xff]
    %v123 = vld [vmem:[#allocation3 + $0x20] sm:$0xff]
    %v124 = vld [vmem:[#allocation3 + $0x28] sm:$0xff]
    %v125 = vld [vmem:[#allocation3 + $0x30] sm:$0xff]
    %v126 = vld [vmem:[#allocation3 + $0x38] sm:$0xff]
    %v127 = vld [vmem:[#allocation3 + $0x40] sm:$0xff]
    %v128 = vld [vmem:[#allocation3 + $0x48] sm:$0xff]
    %v129 = vld [vmem:[#allocation3 + $0x50] sm:$0xff]
    %v130 = vld [vmem:[#allocation3 + $0x58] sm:$0xff]
    %v131 = vld [vmem:[#allocation3 + $0x60] sm:$0xff]
    %v132 = vld [vmem:[#allocation3 + $0x68] sm:$0xff]
    %v133 = vld [vmem:[#allocation3 + $0x70] sm:$0xff]
    %v134 = vld [vmem:[#allocation3 + $0x78] sm:$0xff]
    %v135 = vld [vmem:[#allocation3 + $0x80] sm:$0xff]
    %v136 = vld [vmem:[#allocation3 + $0x88] sm:$0xff]
    %v137 = vld [vmem:[#allocation3 + $0x90] sm:$0xff]
    %v138 = vld [vmem:[#allocation3 + $0x98] sm:$0xff]
    %v139 = vld [vmem:[#allocation3 + $0xa0] sm:$0xff]
    %v140 = vld [vmem:[#allocation3 + $0xa8] sm:$0xff]
    %v141 = vld [vmem:[#allocation3 + $0xb0] sm:$0xff]
    %v142 = vld [vmem:[#allocation3 + $0xb8] sm:$0xff]
    %v143 = vld [vmem:[#allocation3 + $0xc0] sm:$0xff]
    %v144 = vld [vmem:[#allocation3 + $0xc8] sm:$0xff]
    %v145 = vld [vmem:[#allocation3 + $0xd0] sm:$0xff]
    %v146 = vld [vmem:[#allocation3 + $0xd8] sm:$0xff]
    %v147 = vld [vmem:[#allocation3 + $0xe0] sm:$0xff]
    %v148 = vld [vmem:[#allocation3 + $0xe8] sm:$0xff]
    %v149 = vld [vmem:[#allocation3 + $0xf0] sm:$0xff]
    %v150 = vld [vmem:[#allocation3 + $0xf8] sm:$0xff]
    %v151 = vpack.c.bf16 %v120, %v119
    %v152 = vpack.c.bf16 %v122, %v121
    %v153 = vpack.c.bf16 %v124, %v123
    %v154 = vpack.c.bf16 %v126, %v125
    %v155 = vpack.c.bf16 %v128, %v127
    %v156 = vpack.c.bf16 %v130, %v129
    %v157 = vpack.c.bf16 %v132, %v131
    %v158 = vpack.c.bf16 %v134, %v133
    %v159 = vpack.c.bf16 %v136, %v135
    %v160 = vpack.c.bf16 %v138, %v137
    %v161 = vpack.c.bf16 %v140, %v139
    %v162 = vpack.c.bf16 %v142, %v141
    %v163 = vpack.c.bf16 %v144, %v143
    %v164 = vpack.c.bf16 %v146, %v145
    %v165 = vpack.c.bf16 %v148, %v147
    %v166 = vpack.c.bf16 %v150, %v149
    %v167 = vld [vmem:[#allocation6] sm:$0xf]
    %v168 = vld [vmem:[#allocation6 + $0x4] sm:$0xf]
    %v169 = vld [vmem:[#allocation6 + $0x8] sm:$0xf]
    %v170 = vld [vmem:[#allocation6 + $0xc] sm:$0xf]
    %v171 = vld [vmem:[#allocation6 + $0x10] sm:$0xf]
    %v172 = vld [vmem:[#allocation6 + $0x14] sm:$0xf]
    %v173 = vld [vmem:[#allocation6 + $0x18] sm:$0xf]
    %v174 = vld [vmem:[#allocation6 + $0x1c] sm:$0xf]
    %v175 = vld [vmem:[#allocation6 + $0x20] sm:$0xf]
    %v176 = vld [vmem:[#allocation6 + $0x24] sm:$0xf]
    %v177 = vld [vmem:[#allocation6 + $0x28] sm:$0xf]
    %v178 = vld [vmem:[#allocation6 + $0x2c] sm:$0xf]
    %v179 = vld [vmem:[#allocation6 + $0x30] sm:$0xf]
    %v180 = vld [vmem:[#allocation6 + $0x34] sm:$0xf]
    %v181 = vld [vmem:[#allocation6 + $0x38] sm:$0xf]
    %v182 = vld [vmem:[#allocation6 + $0x3c] sm:$0xf]
    %v199 = vunpack.c.l.b16 %v167
    %v200 = vunpack.c.l.b16 %v168
    %v201 = vunpack.c.l.b16 %v169
    %v202 = vunpack.c.l.b16 %v170
    %v203 = vunpack.c.l.b16 %v171
    %v204 = vunpack.c.l.b16 %v172
    %v205 = vunpack.c.l.b16 %v173
    %v206 = vunpack.c.l.b16 %v174
    %v207 = vunpack.c.l.b16 %v175
    %v208 = vunpack.c.l.b16 %v176
    %v209 = vunpack.c.l.b16 %v177
    %v210 = vunpack.c.l.b16 %v178
    %v211 = vunpack.c.l.b16 %v179
    %v212 = vunpack.c.l.b16 %v180
    %v213 = vunpack.c.l.b16 %v181
    %v214 = vunpack.c.l.b16 %v182
    %v215 = vpack.c.b16 %v200, %v199
    %v216 = vpack.c.b16 %v202, %v201
    %v217 = vpack.c.b16 %v204, %v203
    %v218 = vpack.c.b16 %v206, %v205
    %v219 = vpack.c.b16 %v208, %v207
    %v220 = vpack.c.b16 %v210, %v209
    %v221 = vpack.c.b16 %v212, %v211
    %v222 = vpack.c.b16 %v214, %v213
    %231 = vmatprep.subr.bf16.mxu0 0
    %232 = vmatpush1.bf16.msra.mxu0 %v222
    %233 = vmatprep.subr.bf16.mxu0 0
    %234 = vmatpush1.bf16.msra.mxu0 %v221
    %235 = vmatprep.subr.bf16.mxu0 0
    %236 = vmatpush1.bf16.msra.mxu0 %v220
    %237 = vmatprep.subr.bf16.mxu0 0
    %238 = vmatpush1.bf16.msra.mxu0 %v219
    %239 = vmatprep.subr.bf16.mxu0 0
    %240 = vmatpush1.bf16.msra.mxu0 %v218
    %241 = vmatprep.subr.bf16.mxu0 0
    %242 = vmatpush1.bf16.msra.mxu0 %v217
    %243 = vmatprep.subr.bf16.mxu0 0
    %244 = vmatpush1.bf16.msra.mxu0 %v216
    %245 = vmatprep.subr.bf16.mxu0 0
    %246 = vmatpush1.bf16.msra.mxu0 %v215
    %247 = vmatprep.subr.bf16.mxu0 0
    %248 = vmatpush2.bf16.msra.mxu0 0
    %249 = vmatprep.subr.bf16.mxu0 0
    %250 = vmatpush2.bf16.msra.mxu0 0
    %251 = vmatprep.subr.bf16.mxu0 0
    %252 = vmatpush2.bf16.msra.mxu0 0
    %253 = vmatprep.subr.bf16.mxu0 0
    %254 = vmatpush2.bf16.msra.mxu0 0
    %255 = vmatprep.subr.bf16.mxu0 0
    %256 = vmatpush2.bf16.msra.mxu0 0
    %257 = vmatprep.subr.bf16.mxu0 0
    %258 = vmatpush2.bf16.msra.mxu0 0
    %259 = vmatprep.subr.bf16.mxu0 0
    %260 = vmatpush2.bf16.msra.mxu0 0
    %261 = vmatprep.subr.bf16.mxu0 0
    %262 = vmatpush2.bf16.msra.mxu0 0
    %263 = vmatprep.mubr.bf16.mxu0 0
    %264 = vmatmul.mubr.bf16.gmra.mxu0 %v151
    %v265 = vpop.f32.mrf.mxu0
    %v266 = vadd.f32 0.0, %v265
    %v267 = vpop.f32.mrf.mxu0
    %v268 = vpop.f32.mrf.mxu0
    %v269 = vadd.f32 0.0, %v268
    %v270 = vpop.f32.mrf.mxu0
    %271 = vmatprep.mubr.bf16.mxu0 0
    %272 = vmatmul.mubr.bf16.gmra.mxu0 %v152
    %v273 = vpop.f32.mrf.mxu0
    %v274 = vadd.f32 0.0, %v273
    %v275 = vpop.f32.mrf.mxu0
    %v276 = vpop.f32.mrf.mxu0
    %v277 = vadd.f32 0.0, %v276
    %v278 = vpop.f32.mrf.mxu0
    %279 = vmatprep.mubr.bf16.mxu0 0
    %280 = vmatmul.mubr.bf16.gmra.mxu0 %v153
    %v281 = vpop.f32.mrf.mxu0
    %v282 = vadd.f32 0.0, %v281
    %v283 = vpop.f32.mrf.mxu0
    %v284 = vpop.f32.mrf.mxu0
    %v285 = vadd.f32 0.0, %v284
    %v286 = vpop.f32.mrf.mxu0
    %287 = vmatprep.mubr.bf16.mxu0 0
    %288 = vmatmul.mubr.bf16.gmra.mxu0 %v154
    %v289 = vpop.f32.mrf.mxu0
    %v290 = vadd.f32 0.0, %v289
    %v291 = vpop.f32.mrf.mxu0
    %v292 = vpop.f32.mrf.mxu0
    %v293 = vadd.f32 0.0, %v292
    %v294 = vpop.f32.mrf.mxu0
    %295 = vmatprep.mubr.bf16.mxu0 0
    %296 = vmatmul.mubr.bf16.gmra.mxu0 %v155
    %v297 = vpop.f32.mrf.mxu0
    %v298 = vadd.f32 0.0, %v297
    %v299 = vpop.f32.mrf.mxu0
    %v300 = vpop.f32.mrf.mxu0
    %v301 = vadd.f32 0.0, %v300
    %v302 = vpop.f32.mrf.mxu0
    %303 = vmatprep.mubr.bf16.mxu0 0
    %304 = vmatmul.mubr.bf16.gmra.mxu0 %v156
    %v305 = vpop.f32.mrf.mxu0
    %v306 = vadd.f32 0.0, %v305
    %v307 = vpop.f32.mrf.mxu0
    %v308 = vpop.f32.mrf.mxu0
    %v309 = vadd.f32 0.0, %v308
    %v310 = vpop.f32.mrf.mxu0
    %311 = vmatprep.mubr.bf16.mxu0 0
    %312 = vmatmul.mubr.bf16.gmra.mxu0 %v157
    %v313 = vpop.f32.mrf.mxu0
    %v314 = vadd.f32 0.0, %v313
    %v315 = vpop.f32.mrf.mxu0
    %v316 = vpop.f32.mrf.mxu0
    %v317 = vadd.f32 0.0, %v316
    %v318 = vpop.f32.mrf.mxu0
    %319 = vmatprep.mubr.bf16.mxu0 0
    %320 = vmatmul.mubr.bf16.gmra.mxu0 %v158
    %v321 = vpop.f32.mrf.mxu0
    %v322 = vadd.f32 0.0, %v321
    %v323 = vpop.f32.mrf.mxu0
    %v324 = vpop.f32.mrf.mxu0
    %v325 = vadd.f32 0.0, %v324
    %v326 = vpop.f32.mrf.mxu0
    %327 = vmatprep.mubr.bf16.mxu0 0
    %328 = vmatmul.mubr.bf16.gmra.mxu0 %v159
    %v329 = vpop.f32.mrf.mxu0
    %v330 = vadd.f32 0.0, %v329
    %v331 = vpop.f32.mrf.mxu0
    %v332 = vpop.f32.mrf.mxu0
    %v333 = vadd.f32 0.0, %v332
    %v334 = vpop.f32.mrf.mxu0
    %335 = vmatprep.mubr.bf16.mxu0 0
    %336 = vmatmul.mubr.bf16.gmra.mxu0 %v160
    %v337 = vpop.f32.mrf.mxu0
    %v338 = vadd.f32 0.0, %v337
    %v339 = vpop.f32.mrf.mxu0
    %v340 = vpop.f32.mrf.mxu0
    %v341 = vadd.f32 0.0, %v340
    %v342 = vpop.f32.mrf.mxu0
    %343 = vmatprep.mubr.bf16.mxu0 0
    %344 = vmatmul.mubr.bf16.gmra.mxu0 %v161
    %v345 = vpop.f32.mrf.mxu0
    %v346 = vadd.f32 0.0, %v345
    %v347 = vpop.f32.mrf.mxu0
    %v348 = vpop.f32.mrf.mxu0
    %v349 = vadd.f32 0.0, %v348
    %v350 = vpop.f32.mrf.mxu0
    %351 = vmatprep.mubr.bf16.mxu0 0
    %352 = vmatmul.mubr.bf16.gmra.mxu0 %v162
    %v353 = vpop.f32.mrf.mxu0
    %v354 = vadd.f32 0.0, %v353
    %v355 = vpop.f32.mrf.mxu0
    %v356 = vpop.f32.mrf.mxu0
    %v357 = vadd.f32 0.0, %v356
    %v358 = vpop.f32.mrf.mxu0
    %359 = vmatprep.mubr.bf16.mxu0 0
    %360 = vmatmul.mubr.bf16.gmra.mxu0 %v163
    %v361 = vpop.f32.mrf.mxu0
    %v362 = vadd.f32 0.0, %v361
    %v363 = vpop.f32.mrf.mxu0
    %v364 = vpop.f32.mrf.mxu0
    %v365 = vadd.f32 0.0, %v364
    %v366 = vpop.f32.mrf.mxu0
    %367 = vmatprep.mubr.bf16.mxu0 0
    %368 = vmatmul.mubr.bf16.gmra.mxu0 %v164
    %v369 = vpop.f32.mrf.mxu0
    %v370 = vadd.f32 0.0, %v369
    %v371 = vpop.f32.mrf.mxu0
    %v372 = vpop.f32.mrf.mxu0
    %v373 = vadd.f32 0.0, %v372
    %v374 = vpop.f32.mrf.mxu0
    %375 = vmatprep.mubr.bf16.mxu0 0
    %376 = vmatmul.mubr.bf16.gmra.mxu0 %v165
    %v377 = vpop.f32.mrf.mxu0
    %v378 = vadd.f32 0.0, %v377
    %v379 = vpop.f32.mrf.mxu0
    %v380 = vpop.f32.mrf.mxu0
    %v381 = vadd.f32 0.0, %v380
    %v382 = vpop.f32.mrf.mxu0
    %383 = vmatprep.mubr.bf16.mxu0 0
    %384 = vmatmul.mubr.bf16.gmra.mxu0 %v166
    %v385 = vpop.f32.mrf.mxu0
    %v386 = vadd.f32 0.0, %v385
    %v387 = vpop.f32.mrf.mxu0
    %v388 = vpop.f32.mrf.mxu0
    %v389 = vadd.f32 0.0, %v388
    %v390 = vpop.f32.mrf.mxu0
    %391 = vdwg.mxu0
    %v392 = vadd.f32 %v87, %v266
    %v393 = vadd.f32 %v88, %v269
    %v394 = vadd.f32 %v89, %v274
    %v395 = vadd.f32 %v90, %v277
    %v396 = vadd.f32 %v91, %v282
    %v397 = vadd.f32 %v92, %v285
    %v398 = vadd.f32 %v93, %v290
    %v399 = vadd.f32 %v94, %v293
    %v400 = vadd.f32 %v95, %v298
    %v401 = vadd.f32 %v96, %v301
    %v402 = vadd.f32 %v97, %v306
    %v403 = vadd.f32 %v98, %v309
    %v404 = vadd.f32 %v99, %v314
    %v405 = vadd.f32 %v100, %v317
    %v406 = vadd.f32 %v101, %v322
    %v407 = vadd.f32 %v102, %v325
    %v408 = vadd.f32 %v103, %v330
    %v409 = vadd.f32 %v104, %v333
    %v410 = vadd.f32 %v105, %v338
    %v411 = vadd.f32 %v106, %v341
    %v412 = vadd.f32 %v107, %v346
    %v413 = vadd.f32 %v108, %v349
    %v414 = vadd.f32 %v109, %v354
    %v415 = vadd.f32 %v110, %v357
    %v416 = vadd.f32 %v111, %v362
    %v417 = vadd.f32 %v112, %v365
    %v418 = vadd.f32 %v113, %v370
    %v419 = vadd.f32 %v114, %v373
    %v420 = vadd.f32 %v115, %v378
    %v421 = vadd.f32 %v116, %v381
    %v422 = vadd.f32 %v117, %v386
    %v423 = vadd.f32 %v118, %v389
    %424 = vst [vmem:[#allocation2] sm:$0xff] %v392
    %425 = vst [vmem:[#allocation2 + $0x8] sm:$0xff] %v393
    %426 = vst [vmem:[#allocation2 + $0x10] sm:$0xff] %v394
    %427 = vst [vmem:[#allocation2 + $0x18] sm:$0xff] %v395
    %428 = vst [vmem:[#allocation2 + $0x20] sm:$0xff] %v396
    %429 = vst [vmem:[#allocation2 + $0x28] sm:$0xff] %v397
    %430 = vst [vmem:[#allocation2 + $0x30] sm:$0xff] %v398
    %431 = vst [vmem:[#allocation2 + $0x38] sm:$0xff] %v399
    %432 = vst [vmem:[#allocation2 + $0x40] sm:$0xff] %v400
    %433 = vst [vmem:[#allocation2 + $0x48] sm:$0xff] %v401
    %434 = vst [vmem:[#allocation2 + $0x50] sm:$0xff] %v402
    %435 = vst [vmem:[#allocation2 + $0x58] sm:$0xff] %v403
    %436 = vst [vmem:[#allocation2 + $0x60] sm:$0xff] %v404
    %437 = vst [vmem:[#allocation2 + $0x68] sm:$0xff] %v405
    %438 = vst [vmem:[#allocation2 + $0x70] sm:$0xff] %v406
    %439 = vst [vmem:[#allocation2 + $0x78] sm:$0xff] %v407
    %440 = vst [vmem:[#allocation2 + $0x80] sm:$0xff] %v408
    %441 = vst [vmem:[#allocation2 + $0x88] sm:$0xff] %v409
    %442 = vst [vmem:[#allocation2 + $0x90] sm:$0xff] %v410
    %443 = vst [vmem:[#allocation2 + $0x98] sm:$0xff] %v411
    %444 = vst [vmem:[#allocation2 + $0xa0] sm:$0xff] %v412
    %445 = vst [vmem:[#allocation2 + $0xa8] sm:$0xff] %v413
    %446 = vst [vmem:[#allocation2 + $0xb0] sm:$0xff] %v414
    %447 = vst [vmem:[#allocation2 + $0xb8] sm:$0xff] %v415
    %448 = vst [vmem:[#allocation2 + $0xc0] sm:$0xff] %v416
    %449 = vst [vmem:[#allocation2 + $0xc8] sm:$0xff] %v417
    %450 = vst [vmem:[#allocation2 + $0xd0] sm:$0xff] %v418
    %451 = vst [vmem:[#allocation2 + $0xd8] sm:$0xff] %v419
    %452 = vst [vmem:[#allocation2 + $0xe0] sm:$0xff] %v420
    %453 = vst [vmem:[#allocation2 + $0xe8] sm:$0xff] %v421
    %454 = vst [vmem:[#allocation2 + $0xf0] sm:$0xff] %v422
    %455 = vst [vmem:[#allocation2 + $0xf8] sm:$0xff] %v423
    // Predicated region
    $region26: #{tpu_custom_call.1} parent=1 // pred_check
      %p456 = pneg %p44
    $region27: #{tpu_custom_call.1} parent=1 // pred_check_branch
      %458 = sbr.rel (%p456) target = $region29
    $region28: #{tpu_custom_call.1} parent=1 // pred_region
      %v459 = vld [vmem:[#allocation2] sm:$0xff]
      %v460 = vld [vmem:[#allocation2 + $0x8] sm:$0xff]
      %v461 = vld [vmem:[#allocation2 + $0x10] sm:$0xff]
      %v462 = vld [vmem:[#allocation2 + $0x18] sm:$0xff]
      %v463 = vld [vmem:[#allocation2 + $0x20] sm:$0xff]
      %v464 = vld [vmem:[#allocation2 + $0x28] sm:$0xff]
      %v465 = vld [vmem:[#allocation2 + $0x30] sm:$0xff]
      %v466 = vld [vmem:[#allocation2 + $0x38] sm:$0xff]
      %v467 = vld [vmem:[#allocation2 + $0x40] sm:$0xff]
      %v468 = vld [vmem:[#allocation2 + $0x48] sm:$0xff]
      %v469 = vld [vmem:[#allocation2 + $0x50] sm:$0xff]
      %v470 = vld [vmem:[#allocation2 + $0x58] sm:$0xff]
      %v471 = vld [vmem:[#allocation2 + $0x60] sm:$0xff]
      %v472 = vld [vmem:[#allocation2 + $0x68] sm:$0xff]
      %v473 = vld [vmem:[#allocation2 + $0x70] sm:$0xff]
      %v474 = vld [vmem:[#allocation2 + $0x78] sm:$0xff]
      %v475 = vld [vmem:[#allocation2 + $0x80] sm:$0xff]
      %v476 = vld [vmem:[#allocation2 + $0x88] sm:$0xff]
      %v477 = vld [vmem:[#allocation2 + $0x90] sm:$0xff]
      %v478 = vld [vmem:[#allocation2 + $0x98] sm:$0xff]
      %v479 = vld [vmem:[#allocation2 + $0xa0] sm:$0xff]
      %v480 = vld [vmem:[#allocation2 + $0xa8] sm:$0xff]
      %v481 = vld [vmem:[#allocation2 + $0xb0] sm:$0xff]
      %v482 = vld [vmem:[#allocation2 + $0xb8] sm:$0xff]
      %v483 = vld [vmem:[#allocation2 + $0xc0] sm:$0xff]
      %v484 = vld [vmem:[#allocation2 + $0xc8] sm:$0xff]
      %v485 = vld [vmem:[#allocation2 + $0xd0] sm:$0xff]
      %v486 = vld [vmem:[#allocation2 + $0xd8] sm:$0xff]
      %v487 = vld [vmem:[#allocation2 + $0xe0] sm:$0xff]
      %v488 = vld [vmem:[#allocation2 + $0xe8] sm:$0xff]
      %v489 = vld [vmem:[#allocation2 + $0xf0] sm:$0xff]
      %v490 = vld [vmem:[#allocation2 + $0xf8] sm:$0xff]
      %v491 = vpack.c.bf16 %v460, %v459
      %v492 = vpack.c.bf16 %v462, %v461
      %v493 = vpack.c.bf16 %v464, %v463
      %v494 = vpack.c.bf16 %v466, %v465
      %v495 = vpack.c.bf16 %v468, %v467
      %v496 = vpack.c.bf16 %v470, %v469
      %v497 = vpack.c.bf16 %v472, %v471
      %v498 = vpack.c.bf16 %v474, %v473
      %v499 = vpack.c.bf16 %v476, %v475
      %v500 = vpack.c.bf16 %v478, %v477
      %v501 = vpack.c.bf16 %v480, %v479
      %v502 = vpack.c.bf16 %v482, %v481
      %v503 = vpack.c.bf16 %v484, %v483
      %v504 = vpack.c.bf16 %v486, %v485
      %v505 = vpack.c.bf16 %v488, %v487
      %v506 = vpack.c.bf16 %v490, %v489
      %v523 = vunpack.c.l.b16 %v491
      %v524 = vunpack.c.h.b16 %v491
      %v525 = vunpack.c.l.b16 %v492
      %v526 = vunpack.c.h.b16 %v492
      %v527 = vunpack.c.l.b16 %v493
      %v528 = vunpack.c.h.b16 %v493
      %v529 = vunpack.c.l.b16 %v494
      %v530 = vunpack.c.h.b16 %v494
      %v531 = vunpack.c.l.b16 %v495
      %v532 = vunpack.c.h.b16 %v495
      %v533 = vunpack.c.l.b16 %v496
      %v534 = vunpack.c.h.b16 %v496
      %v535 = vunpack.c.l.b16 %v497
      %v536 = vunpack.c.h.b16 %v497
      %v537 = vunpack.c.l.b16 %v498
      %v538 = vunpack.c.h.b16 %v498
      %v539 = vunpack.c.l.b16 %v499
      %v540 = vunpack.c.h.b16 %v499
      %v541 = vunpack.c.l.b16 %v500
      %v542 = vunpack.c.h.b16 %v500
      %v543 = vunpack.c.l.b16 %v501
      %v544 = vunpack.c.h.b16 %v501
      %v545 = vunpack.c.l.b16 %v502
      %v546 = vunpack.c.h.b16 %v502
      %v547 = vunpack.c.l.b16 %v503
      %v548 = vunpack.c.h.b16 %v503
      %v549 = vunpack.c.l.b16 %v504
      %v550 = vunpack.c.h.b16 %v504
      %v551 = vunpack.c.l.b16 %v505
      %v552 = vunpack.c.h.b16 %v505
      %v553 = vunpack.c.l.b16 %v506
      %v554 = vunpack.c.h.b16 %v506
      %v555 = vpack.c.b16 %v523, %v523
      %v556 = vpack.c.b16 %v524, %v524
      %v557 = vpack.c.b16 %v525, %v525
      %v558 = vpack.c.b16 %v526, %v526
      %v559 = vpack.c.b16 %v527, %v527
      %v560 = vpack.c.b16 %v528, %v528
      %v561 = vpack.c.b16 %v529, %v529
      %v562 = vpack.c.b16 %v530, %v530
      %v563 = vpack.c.b16 %v531, %v531
      %v564 = vpack.c.b16 %v532, %v532
      %v565 = vpack.c.b16 %v533, %v533
      %v566 = vpack.c.b16 %v534, %v534
      %v567 = vpack.c.b16 %v535, %v535
      %v568 = vpack.c.b16 %v536, %v536
      %v569 = vpack.c.b16 %v537, %v537
      %v570 = vpack.c.b16 %v538, %v538
      %v571 = vpack.c.b16 %v539, %v539
      %v572 = vpack.c.b16 %v540, %v540
      %v573 = vpack.c.b16 %v541, %v541
      %v574 = vpack.c.b16 %v542, %v542
      %v575 = vpack.c.b16 %v543, %v543
      %v576 = vpack.c.b16 %v544, %v544
      %v577 = vpack.c.b16 %v545, %v545
      %v578 = vpack.c.b16 %v546, %v546
      %v579 = vpack.c.b16 %v547, %v547
      %v580 = vpack.c.b16 %v548, %v548
      %v581 = vpack.c.b16 %v549, %v549
      %v582 = vpack.c.b16 %v550, %v550
      %v583 = vpack.c.b16 %v551, %v551
      %v584 = vpack.c.b16 %v552, %v552
      %v585 = vpack.c.b16 %v553, %v553
      %v586 = vpack.c.b16 %v554, %v554
      %619 = vst [vmem:[#allocation8] sm:$0xf] %v555
      %620 = vst [vmem:[#allocation8 + $0x4] sm:$0xf] %v556
      %621 = vst [vmem:[#allocation8 + $0x8] sm:$0xf] %v557
      %622 = vst [vmem:[#allocation8 + $0xc] sm:$0xf] %v558
      %623 = vst [vmem:[#allocation8 + $0x10] sm:$0xf] %v559
      %624 = vst [vmem:[#allocation8 + $0x14] sm:$0xf] %v560
      %625 = vst [vmem:[#allocation8 + $0x18] sm:$0xf] %v561
      %626 = vst [vmem:[#allocation8 + $0x1c] sm:$0xf] %v562
      %627 = vst [vmem:[#allocation8 + $0x20] sm:$0xf] %v563
      %628 = vst [vmem:[#allocation8 + $0x24] sm:$0xf] %v564
      %629 = vst [vmem:[#allocation8 + $0x28] sm:$0xf] %v565
      %630 = vst [vmem:[#allocation8 + $0x2c] sm:$0xf] %v566
      %631 = vst [vmem:[#allocation8 + $0x30] sm:$0xf] %v567
      %632 = vst [vmem:[#allocation8 + $0x34] sm:$0xf] %v568
      %633 = vst [vmem:[#allocation8 + $0x38] sm:$0xf] %v569
      %634 = vst [vmem:[#allocation8 + $0x3c] sm:$0xf] %v570
      %635 = vst [vmem:[#allocation8 + $0x40] sm:$0xf] %v571
      %636 = vst [vmem:[#allocation8 + $0x44] sm:$0xf] %v572
      %637 = vst [vmem:[#allocation8 + $0x48] sm:$0xf] %v573
      %638 = vst [vmem:[#allocation8 + $0x4c] sm:$0xf] %v574
      %639 = vst [vmem:[#allocation8 + $0x50] sm:$0xf] %v575
      %640 = vst [vmem:[#allocation8 + $0x54] sm:$0xf] %v576
      %641 = vst [vmem:[#allocation8 + $0x58] sm:$0xf] %v577
      %642 = vst [vmem:[#allocation8 + $0x5c] sm:$0xf] %v578
      %643 = vst [vmem:[#allocation8 + $0x60] sm:$0xf] %v579
      %644 = vst [vmem:[#allocation8 + $0x64] sm:$0xf] %v580
      %645 = vst [vmem:[#allocation8 + $0x68] sm:$0xf] %v581
      %646 = vst [vmem:[#allocation8 + $0x6c] sm:$0xf] %v582
      %647 = vst [vmem:[#allocation8 + $0x70] sm:$0xf] %v583
      %648 = vst [vmem:[#allocation8 + $0x74] sm:$0xf] %v584
      %649 = vst [vmem:[#allocation8 + $0x78] sm:$0xf] %v585
      %650 = vst [vmem:[#allocation8 + $0x7c] sm:$0xf] %v586
    $region29: #{tpu_custom_call.1} parent=1 // pred_fallthru
      _
    // Predicated region
    $region30: #{tpu_custom_call.1} parent=1 // pred_check
      _
    $region31: #{tpu_custom_call.1} parent=1 // pred_check_branch
      %652 = sbr.rel (0) target = $region33
    $region32: #{tpu_custom_call.1} parent=1 // pred_region
      %s654 = ssub.s32 2048, 2048
      %655 = vsyncadd [#allocation5], %s654
      %s656 = sshll.u32 [#allocation8], 4
      %s657 = int_to_ptr.vmem [resolvable:$true] %s656
      %662 = dma.vmem_to_hbm [thread:$0]  %s657, 2048, %s3, [#allocation5], 64, 64, 4
    $region33: #{tpu_custom_call.1} parent=1 // pred_fallthru
      _
    // Predicated region
    $region34: #{tpu_custom_call.1} parent=1 // pred_check
      _
    $region35: #{tpu_custom_call.1} parent=1 // pred_check_branch
      %664 = sbr.rel (0) target = $region37
    $region36: #{tpu_custom_call.1} parent=1 // pred_region
      %665 = dma.done [#allocation5], 2048
    $region37: #{tpu_custom_call.1} parent=1 // pred_fallthru
      _
    %666 = vsyncpa [#allocation4], 1
    %667 = vsyncpa [#allocation7], 1
    %668 = vsyncpa [#allocation5], 1

</llo_original>
